<compile_context>
chip_gen: v6e
topology: v6e:2x2x1
jax: 0.10.0
libtpu: 0.0.40
codegen_flags: <defaults>
</compile_context>

<pallas_src>
import numpy as np
import jax
import jax.numpy as jnp
from jax import lax
from jax.experimental import pallas as pl
from jax.experimental.pallas import tpu as pltpu

NEG = -1e30      # "minus infinity" that stays NaN-free in log-space DP
TILE_N = 512     # lane tile of the fused CE kernel (can be raised on v5e/v6e)


def _round_up(x, m):
    return ((x + m - 1) // m) * m


# ---------------------------------------------------------------------------
# Kernel 1 (fused): weighted BCE (onset+offset) + masked CE (octave+pitch)
#   grid over lane tiles of the padded N axis; SMEM scalar accumulators.
# ---------------------------------------------------------------------------
def _fused_ce_kernel(p_ref, y_ref, w_ref, octl_ref, octt_ref, pcl_ref, pct_ref,
                     out_ref, acc_ref):
    i = pl.program_id(0)

    @pl.when(i == 0)
    def _init():
        for k in range(8):
            acc_ref[k] = jnp.float32(0.0)

    # --- weighted BCE: rows 0/1 = onset/offset, lane-dense (2, TILE) tiles ---
    p = jnp.clip(p_ref[...], 1e-7, 1.0 - 1e-7)            # torch.clip in forward
    y = y_ref[...]
    w = w_ref[...]
    bce = -(y * jnp.log(p) + (1.0 - y) * jnp.log(1.0 - p)) * w
    acc_ref[0] = acc_ref[0] + jnp.sum(bce[0:1, :])
    acc_ref[1] = acc_ref[1] + jnp.sum(w[0:1, :])
    acc_ref[2] = acc_ref[2] + jnp.sum(bce[1:2, :])
    acc_ref[3] = acc_ref[3] + jnp.sum(w[1:2, :])

    # --- masked cross entropy (ignore_index=100).  Layout (C_pad, TILE):
    #     the large N axis is on the 128 lanes, the small class axis on
    #     sublanes, so the LSE reductions run on dense vregs. ---
    def masked_ce(lg, tgt):
        m = jnp.max(lg, axis=0, keepdims=True)
        lse = m + jnp.log(jnp.sum(jnp.exp(lg - m), axis=0, keepdims=True))
        cls = lax.broadcasted_iota(jnp.int32, lg.shape, 0)
        tl = jnp.sum(jnp.where(cls == tgt, lg, 0.0), axis=0, keepdims=True)
        valid = tgt != 100
        nll = jnp.where(valid, lse - tl, 0.0)
        return jnp.sum(nll), jnp.sum(valid.astype(jnp.float32))

    s_o, c_o = masked_ce(octl_ref[...], octt_ref[...])
    acc_ref[4] = acc_ref[4] + s_o
    acc_ref[5] = acc_ref[5] + c_o
    s_p, c_p = masked_ce(pcl_ref[...], pct_ref[...])
    acc_ref[6] = acc_ref[6] + s_p
    acc_ref[7] = acc_ref[7] + c_p

    @pl.when(i == pl.num_programs(0) - 1)
    def _finalize():
        out_ref[0] = acc_ref[0] / jnp.maximum(acc_ref[1], 1e-10)
        out_ref[1] = acc_ref[2] / jnp.maximum(acc_ref[3], 1e-10)
        # match PyTorch semantics: all-ignored batch -> 0/0 (NaN), no clamp
        out_ref[2] = acc_ref[4] / acc_ref[5]
        out_ref[3] = acc_ref[6] / acc_ref[7]


@jax.jit
def fused_ce_losses(on_off_logits_sm, gt, weights, oct_logits3, pc_logits3):
    """Returns (4,) f32: [onset BCE, offset BCE, octave CE, pitch CE]."""
    onset_p = on_off_logits_sm[0, :, 1].astype(jnp.float32)
    offset_p = on_off_logits_sm[0, :, 2].astype(jnp.float32)
    onset_y = gt[0, :, 0].astype(jnp.float32)
    offset_y = gt[0, :, 1].astype(jnp.float32)
    on_w = weights[0, 0, :].astype(jnp.float32)
    off_w = weights[0, 1, :].astype(jnp.float32)

    B, T, c_oct = oct_logits3.shape
    c_pc = pc_logits3.shape[-1]
    N = B * T
    oct_tgt = gt[:, :, 2].astype(jnp.int32).reshape(N)
    pc_tgt = gt[:, :, 3].astype(jnp.int32).reshape(N)
    oct_logits = oct_logits3.reshape(N, c_oct).astype(jnp.float32)
    pc_logits = pc_logits3.reshape(N, c_pc).astype(jnp.float32)

    n_pad = _round_up(max(T, N), TILE_N)

    def pad_row(x, v):
        return jnp.pad(x, (0, n_pad - x.shape[0]), constant_values=v)

    # padding: p=0.5 (finite log), y=0, w=0  -> zero contribution
    p2 = jnp.stack([pad_row(onset_p, 0.5), pad_row(offset_p, 0.5)])
    y2 = jnp.stack([pad_row(onset_y, 0.0), pad_row(offset_y, 0.0)])
    w2 = jnp.stack([pad_row(on_w, 0.0), pad_row(off_w, 0.0)])

    def prep_ce(logits, tgt, c):
        c_pad = _round_up(c, 8)
        lg = jnp.pad(logits.T, ((0, c_pad - c), (0, n_pad - N)),
                     constant_values=NEG)                 # (C_pad, n_pad)
        tg = jnp.pad(tgt, (0, n_pad - N), constant_values=100)[None, :]
        return lg, tg

    oct_l, oct_t = prep_ce(oct_logits, oct_tgt, c_oct)
    pc_l, pc_t = prep_ce(pc_logits, pc_tgt, c_pc)

    def lane_spec(rows):
        return pl.BlockSpec((rows, TILE_N), lambda i: (0, i))

    return pl.pallas_call(
        _fused_ce_kernel,
        out_shape=jax.ShapeDtypeStruct((4,), jnp.float32),
        grid=(n_pad // TILE_N,),
        in_specs=[lane_spec(2), lane_spec(2), lane_spec(2),
                  lane_spec(oct_l.shape[0]), lane_spec(1),
                  lane_spec(pc_l.shape[0]), lane_spec(1)],
        out_specs=pl.BlockSpec(memory_space=pltpu.MemorySpace.SMEM),
        scratch_shapes=[pltpu.SMEM((8,), jnp.float32)],
        compiler_params=pltpu.CompilerParams(
            dimension_semantics=("arbitrary",)),   # reduction axis (shared acc)
    )(p2, y2, w2, oct_l, oct_t, pc_l, pc_t)


# ---------------------------------------------------------------------------
# Kernel 2: CTC forward (blank=0, zero_infinity=True, reduction='mean', N=1)
#   Extended labels + (S, L) are runtime inputs -> no retrace per label length.
# ---------------------------------------------------------------------------
def _ctc_kernel(logp_ref, ext_ref, meta_ref, out_ref, gath_ref):
    T, V = logp_ref.shape
    s_pad = ext_ref.shape[1]
    S = meta_ref[0]                       # 2L+1, runtime scalar (SMEM)
    L = meta_ref[1]                       # target length, runtime scalar (SMEM)

    ext = ext_ref[...]                    # (1, s_pad) extended labels, blank=0
    lane = lax.broadcasted_iota(jnp.int32, (1, s_pad), 1)
    valid_lane = lane < S

    # gather log p(label_s | t) for the whole extended sequence via one matmul
    onehot = (lax.broadcasted_iota(jnp.int32, (V, s_pad), 0) == ext
              ).astype(jnp.float32)
    gath_ref[...] = jnp.dot(logp_ref[...], onehot,
                            preferred_element_type=jnp.float32)

    # hoisted loop-invariant additive masks (per-step selects -> adds)
    ext_m2 = pltpu.roll(ext, shift=2, axis=1)
    mask1 = jnp.where(lane >= 1, 0.0, NEG)
    mask2 = jnp.where((lane >= 2) & (ext != 0) & (ext != ext_m2), 0.0, NEG)
    inv_add = jnp.where(valid_lane, 0.0, NEG)

    row0 = gath_ref[0:1, :]
    alpha0 = jnp.where((lane <= 1) & valid_lane, row0, NEG)

    def body(t, alpha):
        a1 = pltpu.roll(alpha, shift=1, axis=1) + mask1
        a2 = pltpu.roll(alpha, shift=2, axis=1) + mask2
        m = jnp.maximum(jnp.maximum(alpha, a1), a2)
        se = jnp.exp(alpha - m) + jnp.exp(a1 - m) + jnp.exp(a2 - m)
        rowt = gath_ref[pl.ds(t, 1), :]
        return m + jnp.log(se) + rowt + inv_add

    # unrolled so the scheduler can overlap row loads with the exp/log chain
    alpha = lax.fori_loop(1, T, body, alpha0, unroll=8)

    end_mask = ((lane == S - 1) | (lane == S - 2)) & valid_lane
    vals = jnp.where(end_mask, alpha, NEG)
    m2 = jnp.max(vals)
    se2 = jnp.sum(jnp.where(end_mask, jnp.exp(vals - m2), 0.0))
    nll = -(m2 + jnp.log(se2))
    nll = jnp.where(nll > 1e29, 0.0, nll)              # zero_infinity=True
    out_ref[0] = nll / L.astype(jnp.float32)           # reduction='mean', N=1


@jax.jit
def ctc_loss_device(all_result, ext, meta):
    logp = all_result[0].astype(jnp.float32)           # (T, V), batch element 0
    T, V = logp.shape
    s_pad = ext.shape[1]
    return pl.pallas_call(
        _ctc_kernel,
        out_shape=jax.ShapeDtypeStruct((1,), jnp.float32),
        in_specs=[pl.BlockSpec(memory_space=pltpu.MemorySpace.VMEM),
                  pl.BlockSpec(memory_space=pltpu.MemorySpace.VMEM),
                  pl.BlockSpec(memory_space=pltpu.MemorySpace.SMEM)],
        out_specs=pl.BlockSpec(memory_space=pltpu.MemorySpace.SMEM),
        scratch_shapes=[pltpu.VMEM((T, s_pad), jnp.float32)],
    )(logp, ext, meta)


# ---------------------------------------------------------------------------
# CTC_CE_loss.forward equivalent
# ---------------------------------------------------------------------------
def ctc_ce_loss_forward(batch, model_output, total_split_loss,
                        use_ctc=True, use_ce=True):
    _, on_off_logits_sm, pitch_octave_logits, pitch_class_logits, all_result = \
        model_output

    if use_ce:
        ce4 = fused_ce_losses(on_off_logits_sm, batch[3], batch[2],
                              pitch_octave_logits, pitch_class_logits)
    else:
        ce4 = jnp.zeros((4,), jnp.float32)

    if use_ctc:
        # host-side glue: build the extended (blank-interleaved) label row,
        # same for every L up to s_pad -> no kernel retrace across lengths.
        on_off_seq = [2]
        for n in batch[4][0]:
            on_off_seq.extend((1, int(n) - 36 + 3, 2))
        L = len(on_off_seq)
        S = 2 * L + 1
        s_pad = max(128, _round_up(S, 128))
        ext = np.zeros((1, s_pad), np.int32)
        ext[0, 1:2 * L:2] = np.asarray(on_off_seq, np.int32)
        meta = np.asarray([S, L], np.int32)
        l4 = ctc_loss_device(all_result, jnp.asarray(ext), jnp.asarray(meta))
    else:
        l4 = jnp.zeros((1,), jnp.float32)

    splits = jnp.concatenate([ce4, l4])
    loss = jnp.sum(splits)

    # TODO(synk): total_split_loss is a Python list (PyTorch used .item()); we
    # keep one device->host sync per forward instead of five.
    split_host = np.asarray(jax.device_get(splits))
    for k in range(5):
        total_split_loss[k] += float(split_host[k])
    return loss


# ---------------------------------------------------------------------------
if __name__ == "__main__":
    key = jax.random.PRNGKey(0)
    ks = jax.random.split(key, 10)

    B, T, V = 1, 16, 16          # N=1 batch (CTC path uses length-1 lens)
    C_OCT, C_PC = 8, 12

    # model outputs
    on_off_logits_sm = jax.nn.softmax(jax.random.normal(ks[0], (B, T, 3)), axis=-1)
    pitch_octave_logits = jax.random.normal(ks[1], (B, T, C_OCT), dtype=jnp.float32)
    pitch_class_logits = jax.random.normal(ks[2], (B, T, C_PC), dtype=jnp.float32)
    all_result = jax.nn.log_softmax(jax.random.normal(ks[3], (B, T, V)), axis=-1)
    model_output = (None, on_off_logits_sm, pitch_octave_logits,
                    pitch_class_logits, all_result)

    # batch[3]: (B, T, 4) = onset_prob, offset_prob, pitch_octave, pitch_class
    onset_prob = (jax.random.uniform(ks[4], (B, T)) > 0.8).astype(jnp.float32)
    offset_prob = (jax.random.uniform(ks[5], (B, T)) > 0.8).astype(jnp.float32)
    pitch_octave = jax.random.randint(ks[6], (B, T), 0, C_OCT)
    pitch_class = jax.random.randint(ks[7], (B, T), 0, C_PC)
    ignore = jax.random.uniform(ks[8], (B, T)) > 0.75
    pitch_octave = jnp.where(ignore, 100, pitch_octave)
    pitch_class = jnp.where(ignore, 100, pitch_class)
    gt = jnp.stack([onset_prob, offset_prob,
                    pitch_octave.astype(jnp.float32),
                    pitch_class.astype(jnp.float32)], axis=-1)        # (B, T, 4)

    # batch[2]: (B, 2, T) frame weights, batch[4]: note lists
    weights = jax.random.uniform(ks[9], (B, 2, T)) + 0.1
    notes = [[40, 45]]            # labels -> [2, 1, 7, 2, 1, 12, 2]
    batch = (None, None, weights, gt, notes)

    total_split_loss = [0.0, 0.0, 0.0, 0.0, 0.0]
    loss = ctc_ce_loss_forward(batch, model_output, total_split_loss,
                               use_ctc=True, use_ce=True)
    jax.block_until_ready(loss)

    # second call with a different note count: exercises the runtime (S, L)
    # path of the CTC kernel with NO retrace/recompile.
    batch2 = (None, None, weights, gt, [[40, 45, 47]])
    loss2 = ctc_ce_loss_forward(batch2, model_output, total_split_loss,
                                use_ctc=True, use_ce=True)
    jax.block_until_ready(loss2)

    print("KERNEL_OK")
</pallas_src>

<mosaic_0001>
module attributes {stable_mosaic.version = 11 : i64} {
  func.func @_fused_ce_kernel(%arg0: i32, %arg1: memref<2x512xf32, #tpu.memory_space<vmem>>, %arg2: memref<2x512xf32, #tpu.memory_space<vmem>>, %arg3: memref<2x512xf32, #tpu.memory_space<vmem>>, %arg4: memref<8x512xf32, #tpu.memory_space<vmem>>, %arg5: memref<1x512xi32, #tpu.memory_space<vmem>>, %arg6: memref<16x512xf32, #tpu.memory_space<vmem>>, %arg7: memref<1x512xi32, #tpu.memory_space<vmem>>, %arg8: memref<4xf32, #tpu.memory_space<smem>>, %arg9: memref<8xf32, #tpu.memory_space<smem>>) attributes {dimension_semantics = [#tpu.dimension_semantics<arbitrary>], iteration_bounds = array<i64: 1>, scalar_prefetch = 0 : i64, scratch_operands = 1 : i64, tpu.core_type = #tpu.core_type<tc>, window_params = [{transform_indices = @transform_0, window_bounds = array<i64: 2, 512>}, {transform_indices = @transform_1, window_bounds = array<i64: 2, 512>}, {transform_indices = @transform_2, window_bounds = array<i64: 2, 512>}, {transform_indices = @transform_3, window_bounds = array<i64: 8, 512>}, {transform_indices = @transform_4, window_bounds = array<i64: 1, 512>}, {transform_indices = @transform_5, window_bounds = array<i64: 16, 512>}, {transform_indices = @transform_6, window_bounds = array<i64: 1, 512>}, {transform_indices = @transform_7, window_bounds = array<i64: 4>}]} {
    %c0_i32 = arith.constant 0 : i32
    %0 = arith.cmpi eq, %arg0, %c0_i32 : i32
    %1 = arith.extui %0 : i1 to i32
    %c0_i32_0 = arith.constant 0 : i32
    %2 = arith.cmpi ne, %1, %c0_i32_0 : i32
    scf.if %2 {
      %cst_48 = arith.constant 0.000000e+00 : f32
      %c0_49 = arith.constant 0 : index
      %135 = memref.load %arg9[%c0_49] : memref<8xf32, #tpu.memory_space<smem>>
      memref.store %cst_48, %arg9[%c0_49] : memref<8xf32, #tpu.memory_space<smem>>
      %cst_50 = arith.constant 0.000000e+00 : f32
      %c1_51 = arith.constant 1 : index
      %136 = memref.load %arg9[%c1_51] : memref<8xf32, #tpu.memory_space<smem>>
      memref.store %cst_50, %arg9[%c1_51] : memref<8xf32, #tpu.memory_space<smem>>
      %cst_52 = arith.constant 0.000000e+00 : f32
      %c2_53 = arith.constant 2 : index
      %137 = memref.load %arg9[%c2_53] : memref<8xf32, #tpu.memory_space<smem>>
      memref.store %cst_52, %arg9[%c2_53] : memref<8xf32, #tpu.memory_space<smem>>
      %cst_54 = arith.constant 0.000000e+00 : f32
      %c3_55 = arith.constant 3 : index
      %138 = memref.load %arg9[%c3_55] : memref<8xf32, #tpu.memory_space<smem>>
      memref.store %cst_54, %arg9[%c3_55] : memref<8xf32, #tpu.memory_space<smem>>
      %cst_56 = arith.constant 0.000000e+00 : f32
      %c4_57 = arith.constant 4 : index
      %139 = memref.load %arg9[%c4_57] : memref<8xf32, #tpu.memory_space<smem>>
      memref.store %cst_56, %arg9[%c4_57] : memref<8xf32, #tpu.memory_space<smem>>
      %cst_58 = arith.constant 0.000000e+00 : f32
      %c5_59 = arith.constant 5 : index
      %140 = memref.load %arg9[%c5_59] : memref<8xf32, #tpu.memory_space<smem>>
      memref.store %cst_58, %arg9[%c5_59] : memref<8xf32, #tpu.memory_space<smem>>
      %cst_60 = arith.constant 0.000000e+00 : f32
      %c6_61 = arith.constant 6 : index
      %141 = memref.load %arg9[%c6_61] : memref<8xf32, #tpu.memory_space<smem>>
      memref.store %cst_60, %arg9[%c6_61] : memref<8xf32, #tpu.memory_space<smem>>
      %cst_62 = arith.constant 0.000000e+00 : f32
      %c7_63 = arith.constant 7 : index
      %142 = memref.load %arg9[%c7_63] : memref<8xf32, #tpu.memory_space<smem>>
      memref.store %cst_62, %arg9[%c7_63] : memref<8xf32, #tpu.memory_space<smem>>
    } else {
    }
    %c0 = arith.constant 0 : index
    %c0_1 = arith.constant 0 : index
    %3 = vector.load %arg1[%c0, %c0_1] : memref<2x512xf32, #tpu.memory_space<vmem>>, vector<2x512xf32>
    %cst = arith.constant 1.000000e-07 : f32
    %cst_2 = arith.constant 0.99999988 : f32
    %4 = vector.broadcast %cst : f32 to vector<2x512xf32>
    %5 = arith.maximumf %4, %3 : vector<2x512xf32>
    %6 = vector.broadcast %cst_2 : f32 to vector<2x512xf32>
    %7 = arith.minimumf %6, %5 : vector<2x512xf32>
    %c0_3 = arith.constant 0 : index
    %c0_4 = arith.constant 0 : index
    %8 = vector.load %arg2[%c0_3, %c0_4] : memref<2x512xf32, #tpu.memory_space<vmem>>, vector<2x512xf32>
    %c0_5 = arith.constant 0 : index
    %c0_6 = arith.constant 0 : index
    %9 = vector.load %arg3[%c0_5, %c0_6] : memref<2x512xf32, #tpu.memory_space<vmem>>, vector<2x512xf32>
    %10 = math.log %7 : vector<2x512xf32>
    %11 = arith.mulf %8, %10 : vector<2x512xf32>
    %cst_7 = arith.constant 1.000000e+00 : f32
    %12 = vector.broadcast %cst_7 : f32 to vector<2x512xf32>
    %13 = arith.subf %12, %8 : vector<2x512xf32>
    %cst_8 = arith.constant 1.000000e+00 : f32
    %14 = vector.broadcast %cst_8 : f32 to vector<2x512xf32>
    %15 = arith.subf %14, %7 : vector<2x512xf32>
    %16 = math.log %15 : vector<2x512xf32>
    %17 = arith.mulf %13, %16 : vector<2x512xf32>
    %18 = arith.addf %11, %17 : vector<2x512xf32>
    %cst_9 = arith.constant 0.000000e+00 : f32
    %19 = vector.broadcast %cst_9 : f32 to vector<2x512xf32>
    %20 = arith.subf %19, %18 : vector<2x512xf32>
    %21 = arith.mulf %20, %9 : vector<2x512xf32>
    %c0_10 = arith.constant 0 : index
    %22 = memref.load %arg9[%c0_10] : memref<8xf32, #tpu.memory_space<smem>>
    %23 = vector.extract_strided_slice %21 {offsets = [0, 0], sizes = [1, 512], strides = [1, 1]} : vector<2x512xf32> to vector<1x512xf32>
    %24 = vector.shape_cast %23 : vector<1x512xf32> to vector<1x1x512xf32>
    %cst_11 = arith.constant dense<0.000000e+00> : vector<1xf32>
    %25 = vector.multi_reduction <add>, %24, %cst_11 [1, 2] : vector<1x1x512xf32> to vector<1xf32>
    %26 = vector.shape_cast %25 : vector<1xf32> to vector<1x1x1xf32>
    %27 = vector.extract %26[0, 0, 0] : f32 from vector<1x1x1xf32>
    %28 = arith.addf %22, %27 : f32
    %c0_12 = arith.constant 0 : index
    %29 = memref.load %arg9[%c0_12] : memref<8xf32, #tpu.memory_space<smem>>
    memref.store %28, %arg9[%c0_12] : memref<8xf32, #tpu.memory_space<smem>>
    %c1 = arith.constant 1 : index
    %30 = memref.load %arg9[%c1] : memref<8xf32, #tpu.memory_space<smem>>
    %31 = vector.extract_strided_slice %9 {offsets = [0, 0], sizes = [1, 512], strides = [1, 1]} : vector<2x512xf32> to vector<1x512xf32>
    %32 = vector.shape_cast %31 : vector<1x512xf32> to vector<1x1x512xf32>
    %cst_13 = arith.constant dense<0.000000e+00> : vector<1xf32>
    %33 = vector.multi_reduction <add>, %32, %cst_13 [1, 2] : vector<1x1x512xf32> to vector<1xf32>
    %34 = vector.shape_cast %33 : vector<1xf32> to vector<1x1x1xf32>
    %35 = vector.extract %34[0, 0, 0] : f32 from vector<1x1x1xf32>
    %36 = arith.addf %30, %35 : f32
    %c1_14 = arith.constant 1 : index
    %37 = memref.load %arg9[%c1_14] : memref<8xf32, #tpu.memory_space<smem>>
    memref.store %36, %arg9[%c1_14] : memref<8xf32, #tpu.memory_space<smem>>
    %c2 = arith.constant 2 : index
    %38 = memref.load %arg9[%c2] : memref<8xf32, #tpu.memory_space<smem>>
    %39 = vector.extract_strided_slice %21 {offsets = [1, 0], sizes = [1, 512], strides = [1, 1]} : vector<2x512xf32> to vector<1x512xf32>
    %40 = vector.shape_cast %39 : vector<1x512xf32> to vector<1x1x512xf32>
    %cst_15 = arith.constant dense<0.000000e+00> : vector<1xf32>
    %41 = vector.multi_reduction <add>, %40, %cst_15 [1, 2] : vector<1x1x512xf32> to vector<1xf32>
    %42 = vector.shape_cast %41 : vector<1xf32> to vector<1x1x1xf32>
    %43 = vector.extract %42[0, 0, 0] : f32 from vector<1x1x1xf32>
    %44 = arith.addf %38, %43 : f32
    %c2_16 = arith.constant 2 : index
    %45 = memref.load %arg9[%c2_16] : memref<8xf32, #tpu.memory_space<smem>>
    memref.store %44, %arg9[%c2_16] : memref<8xf32, #tpu.memory_space<smem>>
    %c3 = arith.constant 3 : index
    %46 = memref.load %arg9[%c3] : memref<8xf32, #tpu.memory_space<smem>>
    %47 = vector.extract_strided_slice %9 {offsets = [1, 0], sizes = [1, 512], strides = [1, 1]} : vector<2x512xf32> to vector<1x512xf32>
    %48 = vector.shape_cast %47 : vector<1x512xf32> to vector<1x1x512xf32>
    %cst_17 = arith.constant dense<0.000000e+00> : vector<1xf32>
    %49 = vector.multi_reduction <add>, %48, %cst_17 [1, 2] : vector<1x1x512xf32> to vector<1xf32>
    %50 = vector.shape_cast %49 : vector<1xf32> to vector<1x1x1xf32>
    %51 = vector.extract %50[0, 0, 0] : f32 from vector<1x1x1xf32>
    %52 = arith.addf %46, %51 : f32
    %c3_18 = arith.constant 3 : index
    %53 = memref.load %arg9[%c3_18] : memref<8xf32, #tpu.memory_space<smem>>
    memref.store %52, %arg9[%c3_18] : memref<8xf32, #tpu.memory_space<smem>>
    %c0_19 = arith.constant 0 : index
    %c0_20 = arith.constant 0 : index
    %54 = vector.load %arg4[%c0_19, %c0_20] : memref<8x512xf32, #tpu.memory_space<vmem>>, vector<8x512xf32>
    %c0_21 = arith.constant 0 : index
    %c0_22 = arith.constant 0 : index
    %55 = vector.load %arg5[%c0_21, %c0_22] : memref<1x512xi32, #tpu.memory_space<vmem>>, vector<1x512xi32>
    %cst_23 = arith.constant dense<0xFF800000> : vector<512xf32>
    %56 = vector.multi_reduction <maximumf>, %54, %cst_23 [0] : vector<8x512xf32> to vector<512xf32>
    %57 = vector.shape_cast %56 : vector<512xf32> to vector<1x512xf32>
    %58 = vector.broadcast %57 : vector<1x512xf32> to vector<8x512xf32>
    %59 = arith.subf %54, %58 : vector<8x512xf32>
    %60 = math.exp %59 : vector<8x512xf32>
    %cst_24 = arith.constant dense<0.000000e+00> : vector<512xf32>
    %61 = vector.multi_reduction <add>, %60, %cst_24 [0] : vector<8x512xf32> to vector<512xf32>
    %62 = vector.shape_cast %61 : vector<512xf32> to vector<1x512xf32>
    %63 = math.log %62 : vector<1x512xf32>
    %64 = arith.addf %57, %63 : vector<1x512xf32>
    %65 = tpu.iota {dimensions = array<i32: 0>} : vector<8x512xi32>
    %66 = vector.broadcast %55 : vector<1x512xi32> to vector<8x512xi32>
    %67 = arith.cmpi eq, %65, %66 : vector<8x512xi32>
    %cst_25 = arith.constant 0.000000e+00 : f32
    %68 = vector.broadcast %cst_25 : f32 to vector<8x512xf32>
    %69 = arith.select %67, %54, %68 : vector<8x512xi1>, vector<8x512xf32>
    %cst_26 = arith.constant dense<0.000000e+00> : vector<512xf32>
    %70 = vector.multi_reduction <add>, %69, %cst_26 [0] : vector<8x512xf32> to vector<512xf32>
    %71 = vector.shape_cast %70 : vector<512xf32> to vector<1x512xf32>
    %c100_i32 = arith.constant 100 : i32
    %72 = vector.broadcast %c100_i32 : i32 to vector<1x512xi32>
    %73 = arith.cmpi ne, %55, %72 : vector<1x512xi32>
    %74 = arith.subf %64, %71 : vector<1x512xf32>
    %cst_27 = arith.constant 0.000000e+00 : f32
    %75 = vector.broadcast %cst_27 : f32 to vector<1x512xf32>
    %76 = arith.select %73, %74, %75 : vector<1x512xi1>, vector<1x512xf32>
    %77 = vector.shape_cast %76 : vector<1x512xf32> to vector<1x1x512xf32>
    %cst_28 = arith.constant dense<0.000000e+00> : vector<1xf32>
    %78 = vector.multi_reduction <add>, %77, %cst_28 [1, 2] : vector<1x1x512xf32> to vector<1xf32>
    %79 = vector.shape_cast %78 : vector<1xf32> to vector<1x1x1xf32>
    %80 = vector.extract %79[0, 0, 0] : f32 from vector<1x1x1xf32>
    %81 = arith.extui %73 : vector<1x512xi1> to vector<1x512xi32>
    %82 = arith.sitofp %81 : vector<1x512xi32> to vector<1x512xf32>
    %83 = vector.shape_cast %82 : vector<1x512xf32> to vector<1x1x512xf32>
    %cst_29 = arith.constant dense<0.000000e+00> : vector<1xf32>
    %84 = vector.multi_reduction <add>, %83, %cst_29 [1, 2] : vector<1x1x512xf32> to vector<1xf32>
    %85 = vector.shape_cast %84 : vector<1xf32> to vector<1x1x1xf32>
    %86 = vector.extract %85[0, 0, 0] : f32 from vector<1x1x1xf32>
    %c4 = arith.constant 4 : index
    %87 = memref.load %arg9[%c4] : memref<8xf32, #tpu.memory_space<smem>>
    %88 = arith.addf %87, %80 : f32
    %c4_30 = arith.constant 4 : index
    %89 = memref.load %arg9[%c4_30] : memref<8xf32, #tpu.memory_space<smem>>
    memref.store %88, %arg9[%c4_30] : memref<8xf32, #tpu.memory_space<smem>>
    %c5 = arith.constant 5 : index
    %90 = memref.load %arg9[%c5] : memref<8xf32, #tpu.memory_space<smem>>
    %91 = arith.addf %90, %86 : f32
    %c5_31 = arith.constant 5 : index
    %92 = memref.load %arg9[%c5_31] : memref<8xf32, #tpu.memory_space<smem>>
    memref.store %91, %arg9[%c5_31] : memref<8xf32, #tpu.memory_space<smem>>
    %c0_32 = arith.constant 0 : index
    %c0_33 = arith.constant 0 : index
    %93 = vector.load %arg6[%c0_32, %c0_33] : memref<16x512xf32, #tpu.memory_space<vmem>>, vector<16x512xf32>
    %c0_34 = arith.constant 0 : index
    %c0_35 = arith.constant 0 : index
    %94 = vector.load %arg7[%c0_34, %c0_35] : memref<1x512xi32, #tpu.memory_space<vmem>>, vector<1x512xi32>
    %cst_36 = arith.constant dense<0xFF800000> : vector<512xf32>
    %95 = vector.multi_reduction <maximumf>, %93, %cst_36 [0] : vector<16x512xf32> to vector<512xf32>
    %96 = vector.shape_cast %95 : vector<512xf32> to vector<1x512xf32>
    %97 = vector.broadcast %96 : vector<1x512xf32> to vector<16x512xf32>
    %98 = arith.subf %93, %97 : vector<16x512xf32>
    %99 = math.exp %98 : vector<16x512xf32>
    %cst_37 = arith.constant dense<0.000000e+00> : vector<512xf32>
    %100 = vector.multi_reduction <add>, %99, %cst_37 [0] : vector<16x512xf32> to vector<512xf32>
    %101 = vector.shape_cast %100 : vector<512xf32> to vector<1x512xf32>
    %102 = math.log %101 : vector<1x512xf32>
    %103 = arith.addf %96, %102 : vector<1x512xf32>
    %104 = tpu.iota {dimensions = array<i32: 0>} : vector<16x512xi32>
    %105 = vector.broadcast %94 : vector<1x512xi32> to vector<16x512xi32>
    %106 = arith.cmpi eq, %104, %105 : vector<16x512xi32>
    %cst_38 = arith.constant 0.000000e+00 : f32
    %107 = vector.broadcast %cst_38 : f32 to vector<16x512xf32>
    %108 = arith.select %106, %93, %107 : vector<16x512xi1>, vector<16x512xf32>
    %cst_39 = arith.constant dense<0.000000e+00> : vector<512xf32>
    %109 = vector.multi_reduction <add>, %108, %cst_39 [0] : vector<16x512xf32> to vector<512xf32>
    %110 = vector.shape_cast %109 : vector<512xf32> to vector<1x512xf32>
    %c100_i32_40 = arith.constant 100 : i32
    %111 = vector.broadcast %c100_i32_40 : i32 to vector<1x512xi32>
    %112 = arith.cmpi ne, %94, %111 : vector<1x512xi32>
    %113 = arith.subf %103, %110 : vector<1x512xf32>
    %cst_41 = arith.constant 0.000000e+00 : f32
    %114 = vector.broadcast %cst_41 : f32 to vector<1x512xf32>
    %115 = arith.select %112, %113, %114 : vector<1x512xi1>, vector<1x512xf32>
    %116 = vector.shape_cast %115 : vector<1x512xf32> to vector<1x1x512xf32>
    %cst_42 = arith.constant dense<0.000000e+00> : vector<1xf32>
    %117 = vector.multi_reduction <add>, %116, %cst_42 [1, 2] : vector<1x1x512xf32> to vector<1xf32>
    %118 = vector.shape_cast %117 : vector<1xf32> to vector<1x1x1xf32>
    %119 = vector.extract %118[0, 0, 0] : f32 from vector<1x1x1xf32>
    %120 = arith.extui %112 : vector<1x512xi1> to vector<1x512xi32>
    %121 = arith.sitofp %120 : vector<1x512xi32> to vector<1x512xf32>
    %122 = vector.shape_cast %121 : vector<1x512xf32> to vector<1x1x512xf32>
    %cst_43 = arith.constant dense<0.000000e+00> : vector<1xf32>
    %123 = vector.multi_reduction <add>, %122, %cst_43 [1, 2] : vector<1x1x512xf32> to vector<1xf32>
    %124 = vector.shape_cast %123 : vector<1xf32> to vector<1x1x1xf32>
    %125 = vector.extract %124[0, 0, 0] : f32 from vector<1x1x1xf32>
    %c6 = arith.constant 6 : index
    %126 = memref.load %arg9[%c6] : memref<8xf32, #tpu.memory_space<smem>>
    %127 = arith.addf %126, %119 : f32
    %c6_44 = arith.constant 6 : index
    %128 = memref.load %arg9[%c6_44] : memref<8xf32, #tpu.memory_space<smem>>
    memref.store %127, %arg9[%c6_44] : memref<8xf32, #tpu.memory_space<smem>>
    %c7 = arith.constant 7 : index
    %129 = memref.load %arg9[%c7] : memref<8xf32, #tpu.memory_space<smem>>
    %130 = arith.addf %129, %125 : f32
    %c7_45 = arith.constant 7 : index
    %131 = memref.load %arg9[%c7_45] : memref<8xf32, #tpu.memory_space<smem>>
    memref.store %130, %arg9[%c7_45] : memref<8xf32, #tpu.memory_space<smem>>
    %c0_i32_46 = arith.constant 0 : i32
    %132 = arith.cmpi eq, %arg0, %c0_i32_46 : i32
    %133 = arith.extui %132 : i1 to i32
    %c0_i32_47 = arith.constant 0 : i32
    %134 = arith.cmpi ne, %133, %c0_i32_47 : i32
    scf.if %134 {
      %c0_48 = arith.constant 0 : index
      %135 = memref.load %arg9[%c0_48] : memref<8xf32, #tpu.memory_space<smem>>
      %c1_49 = arith.constant 1 : index
      %136 = memref.load %arg9[%c1_49] : memref<8xf32, #tpu.memory_space<smem>>
      %cst_50 = arith.constant 1.000000e-10 : f32
      %137 = arith.maximumf %136, %cst_50 : f32
      %138 = arith.divf %135, %137 : f32
      %c0_51 = arith.constant 0 : index
      %139 = memref.load %arg8[%c0_51] : memref<4xf32, #tpu.memory_space<smem>>
      memref.store %138, %arg8[%c0_51] : memref<4xf32, #tpu.memory_space<smem>>
      %c2_52 = arith.constant 2 : index
      %140 = memref.load %arg9[%c2_52] : memref<8xf32, #tpu.memory_space<smem>>
      %c3_53 = arith.constant 3 : index
      %141 = memref.load %arg9[%c3_53] : memref<8xf32, #tpu.memory_space<smem>>
      %cst_54 = arith.constant 1.000000e-10 : f32
      %142 = arith.maximumf %141, %cst_54 : f32
      %143 = arith.divf %140, %142 : f32
      %c1_55 = arith.constant 1 : index
      %144 = memref.load %arg8[%c1_55] : memref<4xf32, #tpu.memory_space<smem>>
      memref.store %143, %arg8[%c1_55] : memref<4xf32, #tpu.memory_space<smem>>
      %c4_56 = arith.constant 4 : index
      %145 = memref.load %arg9[%c4_56] : memref<8xf32, #tpu.memory_space<smem>>
      %c5_57 = arith.constant 5 : index
      %146 = memref.load %arg9[%c5_57] : memref<8xf32, #tpu.memory_space<smem>>
      %147 = arith.divf %145, %146 : f32
      %c2_58 = arith.constant 2 : index
      %148 = memref.load %arg8[%c2_58] : memref<4xf32, #tpu.memory_space<smem>>
      memref.store %147, %arg8[%c2_58] : memref<4xf32, #tpu.memory_space<smem>>
      %c6_59 = arith.constant 6 : index
      %149 = memref.load %arg9[%c6_59] : memref<8xf32, #tpu.memory_space<smem>>
      %c7_60 = arith.constant 7 : index
      %150 = memref.load %arg9[%c7_60] : memref<8xf32, #tpu.memory_space<smem>>
      %151 = arith.divf %149, %150 : f32
      %c3_61 = arith.constant 3 : index
      %152 = memref.load %arg8[%c3_61] : memref<4xf32, #tpu.memory_space<smem>>
      memref.store %151, %arg8[%c3_61] : memref<4xf32, #tpu.memory_space<smem>>
    } else {
    }
    return
  }
  func.func @transform_0(%arg0: i32) -> (i32, i32) {
    %c0_i32 = arith.constant 0 : i32
    %c0_i32_0 = arith.constant 0 : i32
    return %c0_i32, %arg0 : i32, i32
  }
  func.func @transform_1(%arg0: i32) -> (i32, i32) {
    %c0_i32 = arith.constant 0 : i32
    %c0_i32_0 = arith.constant 0 : i32
    return %c0_i32, %arg0 : i32, i32
  }
  func.func @transform_2(%arg0: i32) -> (i32, i32) {
    %c0_i32 = arith.constant 0 : i32
    %c0_i32_0 = arith.constant 0 : i32
    return %c0_i32, %arg0 : i32, i32
  }
  func.func @transform_3(%arg0: i32) -> (i32, i32) {
    %c0_i32 = arith.constant 0 : i32
    %c0_i32_0 = arith.constant 0 : i32
    return %c0_i32, %arg0 : i32, i32
  }
  func.func @transform_4(%arg0: i32) -> (i32, i32) {
    %c0_i32 = arith.constant 0 : i32
    %c0_i32_0 = arith.constant 0 : i32
    return %c0_i32, %arg0 : i32, i32
  }
  func.func @transform_5(%arg0: i32) -> (i32, i32) {
    %c0_i32 = arith.constant 0 : i32
    %c0_i32_0 = arith.constant 0 : i32
    return %c0_i32, %arg0 : i32, i32
  }
  func.func @transform_6(%arg0: i32) -> (i32, i32) {
    %c0_i32 = arith.constant 0 : i32
    %c0_i32_0 = arith.constant 0 : i32
    return %c0_i32, %arg0 : i32, i32
  }
  func.func @transform_7(%arg0: i32) -> i32 {
    %c0_i32 = arith.constant 0 : i32
    %c0_i32_0 = arith.constant 0 : i32
    return %c0_i32 : i32
  }
}

</mosaic_0001>

<llo_original>
// kernel: fused_ce_losses.1
$region0: #{fused_ce_losses.1}
  #allocation0 [shape = 'u32[]', space=smem, size = 0x4, offset = 0x4, fixed_abs, tag = 'smem constant byte address 0x4 - core index']
  #allocation1 [shape = 'u32[144,128]{1,0:T(1,128)}', space=vmem, size = 0x12000, scoped, tag = 'internal scratch']
  #allocation2 [shape = 'f32[8]{0:T(128)}', space=smem, size = 0x200, scoped, tag = 'scratch operand']
  %s0 = inlined_call_operand.vmem [shape: f32[2,512], index: 0, kind: input, shape index: {}]
  %s1 = inlined_call_operand.vmem [shape: f32[2,512], index: 1, kind: input, shape index: {}]
  %s2 = inlined_call_operand.vmem [shape: f32[2,512], index: 2, kind: input, shape index: {}]
  %s3 = inlined_call_operand.vmem [shape: f32[8,512], index: 3, kind: input, shape index: {}]
  %s4 = inlined_call_operand.vmem [shape: s32[1,512], index: 4, kind: input, shape index: {}]
  %s5 = inlined_call_operand.vmem [shape: f32[16,512], index: 5, kind: input, shape index: {}]
  %s6 = inlined_call_operand.vmem [shape: s32[1,512], index: 6, kind: input, shape index: {}]
  %s7 = inlined_call_operand.hbm [shape: f32[4], index: 7, kind: output, shape index: {}]
  %s8 = sld [smem:[#allocation0]]
  $region46: #{fused_ce_losses.1} parent=0
    _
  %s10 = ssub.s32 1, %s8
  %s11 = scalar_select 0, %s10, %s8
  $region1: #{fused_ce_losses.1} parent=0
    #allocation3 [shape = 'u8[512]{0}', space=smem, size = 0x200, scoped, tag = 'output window, operand 0, single buffered']
    #allocation4 [shape = 's32[1]{0}', space=sflag, size = 0x4, scoped, tag = 'scoped memory for fused_ce_losses.1']
    %12 = vsyncpa [#allocation4], 0
    // Predicated region
    $region2: #{fused_ce_losses.1} parent=1 // pred_check
      _
    $region3: #{fused_ce_losses.1} parent=1 // pred_check_branch
      %14 = sbr.rel (0) target = $region5
    $region4: #{fused_ce_losses.1} parent=1 // pred_region
      _
    $region5: #{fused_ce_losses.1} parent=1 // pred_fallthru
      _
    // Predicated region
    $region6: #{fused_ce_losses.1} parent=1 // pred_check
      _
    $region7: #{fused_ce_losses.1} parent=1 // pred_check_branch
      %16 = sbr.rel (0) target = $region9
    $region8: #{fused_ce_losses.1} parent=1 // pred_region
      _
    $region9: #{fused_ce_losses.1} parent=1 // pred_fallthru
      _
    // Predicated region
    $region10: #{fused_ce_losses.1} parent=1 // pred_check
      _
    $region11: #{fused_ce_losses.1} parent=1 // pred_check_branch
      %18 = sbr.rel (0) target = $region13
    $region12: #{fused_ce_losses.1} parent=1 // pred_region
      _
    $region13: #{fused_ce_losses.1} parent=1 // pred_fallthru
      _
    // Predicated region
    $region14: #{fused_ce_losses.1} parent=1 // pred_check
      _
    $region15: #{fused_ce_losses.1} parent=1 // pred_check_branch
      %20 = sbr.rel (0) target = $region17
    $region16: #{fused_ce_losses.1} parent=1 // pred_region
      _
    $region17: #{fused_ce_losses.1} parent=1 // pred_fallthru
      _
    // Predicated region
    $region18: #{fused_ce_losses.1} parent=1 // pred_check
      _
    $region19: #{fused_ce_losses.1} parent=1 // pred_check_branch
      %22 = sbr.rel (0) target = $region21
    $region20: #{fused_ce_losses.1} parent=1 // pred_region
      _
    $region21: #{fused_ce_losses.1} parent=1 // pred_fallthru
      _
    // Predicated region
    $region22: #{fused_ce_losses.1} parent=1 // pred_check
      _
    $region23: #{fused_ce_losses.1} parent=1 // pred_check_branch
      %24 = sbr.rel (0) target = $region25
    $region24: #{fused_ce_losses.1} parent=1 // pred_region
      _
    $region25: #{fused_ce_losses.1} parent=1 // pred_fallthru
      _
    // Predicated region
    $region26: #{fused_ce_losses.1} parent=1 // pred_check
      _
    $region27: #{fused_ce_losses.1} parent=1 // pred_check_branch
      %26 = sbr.rel (0) target = $region29
    $region28: #{fused_ce_losses.1} parent=1 // pred_region
      _
    $region29: #{fused_ce_losses.1} parent=1 // pred_fallthru
      _
    %p27 = scmp.eq.s32.totalorder 0, 0
    // Predicated region
    $region30: #{fused_ce_losses.1} parent=1 // pred_check
      %p28 = pneg %p27
    $region31: #{fused_ce_losses.1} parent=1 // pred_check_branch
      %30 = sbr.rel (%p28) target = $region33
    $region32: #{fused_ce_losses.1} parent=1 // pred_region
      %s31 = scalar_lea.smem [#allocation2], 0
      %32 = sst [smem:[%s31]] 0.0
      %s33 = scalar_lea.smem [#allocation2], 1
      %34 = sst [smem:[%s33]] 0.0
      %s35 = scalar_lea.smem [#allocation2], 2
      %36 = sst [smem:[%s35]] 0.0
      %s37 = scalar_lea.smem [#allocation2], 3
      %38 = sst [smem:[%s37]] 0.0
      %s39 = scalar_lea.smem [#allocation2], 4
      %40 = sst [smem:[%s39]] 0.0
      %s41 = scalar_lea.smem [#allocation2], 5
      %42 = sst [smem:[%s41]] 0.0
      %s43 = scalar_lea.smem [#allocation2], 6
      %44 = sst [smem:[%s43]] 0.0
      %s45 = scalar_lea.smem [#allocation2], 7
      %46 = sst [smem:[%s45]] 0.0
    $region33: #{fused_ce_losses.1} parent=1 // pred_fallthru
      _
    %v47 = vld [vmem:[%s0] sm:$0xff]
    %v48 = vmax.f32 %v47, 1e-07
    %v49 = vmin.f32 %v48, 0.9999999
    %v50 = vld [vmem:[%s1] sm:$0xff]
    %v51 = vld [vmem:[%s2] sm:$0xff]
    %v52 = vlog2.pop %v49
    %v53 = vmul.f32 %v52, 0.6931472
    %v54 = vmul.f32 %v50, %v53
    %v55 = vsub.f32 1.0, %v50
    %v56 = vsub.f32 1.0, %v49
    %v57 = vlog2.pop %v56
    %v58 = vmul.f32 %v57, 0.6931472
    %v59 = vmul.f32 %v55, %v58
    %v60 = vadd.f32 %v54, %v59
    %v61 = vsub.f32 0.0, %v60
    %v62 = vmul.f32 %v61, %v51
    %s63 = sld [smem:[#allocation2]]
    %v65 = vlaneseq
    %v66 = vshrl.u32 %v65, 7
    %v67 = vsub.s32 0, %v66
    %v68 = vrot.slane %v62, %v67
    %v69 = vlaneseq
    %v70 = vshrl.u32 %v69, 7
    %v71 = vsub.s32 2, %v70
    %v72 = vrot.slane %v62, %v71
    %v73 = vlaneseq
    %v74 = vshrl.u32 %v73, 7
    %v75 = vsub.s32 4, %v74
    %v76 = vrot.slane %v62, %v75
    %v77 = vlaneseq
    %v78 = vshrl.u32 %v77, 7
    %v79 = vsub.s32 6, %v78
    %v80 = vrot.slane %v62, %v79
    %vm85 = vcmask 1040384
    %v86 = vsel %vm85, %v68, 0.0
    %v87 = vsel %vm85, %v72, 0.0
    %v88 = vadd.f32 %v86, %v87
    %v89 = vsel %vm85, %v76, 0.0
    %v90 = vadd.f32 %v88, %v89
    %v91 = vsel %vm85, %v80, 0.0
    %v92 = vadd.f32 %v90, %v91
    %93 = vadd.xlane.f32.xlu0 %v92
    %v94 = vpop.xlane.xlu0 %93
    %v95 = vrot.slane %v94, 4
    %v96 = vadd.f32 %v94, %v95
    %v97 = vrot.slane %v96, 2
    %v98 = vadd.f32 %v96, %v97
    %v99 = vrot.slane %v98, 1
    %v100 = vadd.f32 %v98, %v99
    %s101 = vtos %v100
    %s102 = sadd.f32 %s63, %s101
    %s103 = scalar_lea.smem [#allocation2], 0
    %104 = sst [smem:[%s103]] %s102
    %s105 = sld [smem:[#allocation2 + $0x1]]
    %v107 = vlaneseq
    %v108 = vshrl.u32 %v107, 7
    %v109 = vsub.s32 0, %v108
    %v110 = vrot.slane %v51, %v109
    %v111 = vlaneseq
    %v112 = vshrl.u32 %v111, 7
    %v113 = vsub.s32 2, %v112
    %v114 = vrot.slane %v51, %v113
    %v115 = vlaneseq
    %v116 = vshrl.u32 %v115, 7
    %v117 = vsub.s32 4, %v116
    %v118 = vrot.slane %v51, %v117
    %v119 = vlaneseq
    %v120 = vshrl.u32 %v119, 7
    %v121 = vsub.s32 6, %v120
    %v122 = vrot.slane %v51, %v121
    %v127 = vsel %vm85, %v110, 0.0
    %v128 = vsel %vm85, %v114, 0.0
    %v129 = vadd.f32 %v127, %v128
    %v130 = vsel %vm85, %v118, 0.0
    %v131 = vadd.f32 %v129, %v130
    %v132 = vsel %vm85, %v122, 0.0
    %v133 = vadd.f32 %v131, %v132
    %134 = vadd.xlane.f32.xlu0 %v133
    %v135 = vpop.xlane.xlu0 %134
    %v136 = vrot.slane %v135, 4
    %v137 = vadd.f32 %v135, %v136
    %v138 = vrot.slane %v137, 2
    %v139 = vadd.f32 %v137, %v138
    %v140 = vrot.slane %v139, 1
    %v141 = vadd.f32 %v139, %v140
    %s142 = vtos %v141
    %s143 = sadd.f32 %s105, %s142
    %s144 = scalar_lea.smem [#allocation2], 1
    %145 = sst [smem:[%s144]] %s143
    %s146 = sld [smem:[#allocation2 + $0x2]]
    %v147 = vlaneseq
    %v148 = vshrl.u32 %v147, 7
    %v149 = vsub.s32 1, %v148
    %v150 = vrot.slane %v62, %v149
    %v151 = vlaneseq
    %v152 = vshrl.u32 %v151, 7
    %v153 = vsub.s32 3, %v152
    %v154 = vrot.slane %v62, %v153
    %v155 = vlaneseq
    %v156 = vshrl.u32 %v155, 7
    %v157 = vsub.s32 5, %v156
    %v158 = vrot.slane %v62, %v157
    %v159 = vlaneseq
    %v160 = vshrl.u32 %v159, 7
    %v161 = vsub.s32 7, %v160
    %v162 = vrot.slane %v62, %v161
    %v167 = vsel %vm85, %v150, 0.0
    %v168 = vsel %vm85, %v154, 0.0
    %v169 = vadd.f32 %v167, %v168
    %v170 = vsel %vm85, %v158, 0.0
    %v171 = vadd.f32 %v169, %v170
    %v172 = vsel %vm85, %v162, 0.0
    %v173 = vadd.f32 %v171, %v172
    %174 = vadd.xlane.f32.xlu0 %v173
    %v175 = vpop.xlane.xlu0 %174
    %v176 = vrot.slane %v175, 4
    %v177 = vadd.f32 %v175, %v176
    %v178 = vrot.slane %v177, 2
    %v179 = vadd.f32 %v177, %v178
    %v180 = vrot.slane %v179, 1
    %v181 = vadd.f32 %v179, %v180
    %s182 = vtos %v181
    %s183 = sadd.f32 %s146, %s182
    %s184 = scalar_lea.smem [#allocation2], 2
    %185 = sst [smem:[%s184]] %s183
    %s186 = sld [smem:[#allocation2 + $0x3]]
    %v187 = vlaneseq
    %v188 = vshrl.u32 %v187, 7
    %v189 = vsub.s32 1, %v188
    %v190 = vrot.slane %v51, %v189
    %v191 = vlaneseq
    %v192 = vshrl.u32 %v191, 7
    %v193 = vsub.s32 3, %v192
    %v194 = vrot.slane %v51, %v193
    %v195 = vlaneseq
    %v196 = vshrl.u32 %v195, 7
    %v197 = vsub.s32 5, %v196
    %v198 = vrot.slane %v51, %v197
    %v199 = vlaneseq
    %v200 = vshrl.u32 %v199, 7
    %v201 = vsub.s32 7, %v200
    %v202 = vrot.slane %v51, %v201
    %v207 = vsel %vm85, %v190, 0.0
    %v208 = vsel %vm85, %v194, 0.0
    %v209 = vadd.f32 %v207, %v208
    %v210 = vsel %vm85, %v198, 0.0
    %v211 = vadd.f32 %v209, %v210
    %v212 = vsel %vm85, %v202, 0.0
    %v213 = vadd.f32 %v211, %v212
    %214 = vadd.xlane.f32.xlu0 %v213
    %v215 = vpop.xlane.xlu0 %214
    %v216 = vrot.slane %v215, 4
    %v217 = vadd.f32 %v215, %v216
    %v218 = vrot.slane %v217, 2
    %v219 = vadd.f32 %v217, %v218
    %v220 = vrot.slane %v219, 1
    %v221 = vadd.f32 %v219, %v220
    %s222 = vtos %v221
    %s223 = sadd.f32 %s186, %s222
    %s224 = scalar_lea.smem [#allocation2], 3
    %225 = sst [smem:[%s224]] %s223
    %v226 = vld [vmem:[%s3] sm:$0xff]
    %v227 = vld [vmem:[%s3 + $0x8] sm:$0xff]
    %v228 = vld [vmem:[%s3 + $0x10] sm:$0xff]
    %v229 = vld [vmem:[%s3 + $0x18] sm:$0xff]
    %v230 = vld [vmem:[%s4] sm:$0xf]
    %v231 = vrot.slane %v226, 4
    %v232 = vmax.f32 %v226, %v231
    %v233 = vrot.slane %v232, 2
    %v234 = vmax.f32 %v232, %v233
    %v235 = vrot.slane %v234, 1
    %v236 = vmax.f32 %v234, %v235
    %v237 = vrot.slane %v227, 4
    %v238 = vmax.f32 %v227, %v237
    %v239 = vrot.slane %v238, 2
    %v240 = vmax.f32 %v238, %v239
    %v241 = vrot.slane %v240, 1
    %v242 = vmax.f32 %v240, %v241
    %v243 = vrot.slane %v228, 4
    %v244 = vmax.f32 %v228, %v243
    %v245 = vrot.slane %v244, 2
    %v246 = vmax.f32 %v244, %v245
    %v247 = vrot.slane %v246, 1
    %v248 = vmax.f32 %v246, %v247
    %v249 = vrot.slane %v229, 4
    %v250 = vmax.f32 %v229, %v249
    %v251 = vrot.slane %v250, 2
    %v252 = vmax.f32 %v250, %v251
    %v253 = vrot.slane %v252, 1
    %v254 = vmax.f32 %v252, %v253
    %v255 = vsub.f32 %v226, %v236
    %v256 = vsub.f32 %v227, %v242
    %v257 = vsub.f32 %v228, %v248
    %v258 = vsub.f32 %v229, %v254
    %v259 = vmul.f32 %v255, 1.442695
    %v260 = vpow.pop %v259
    %v261 = vmul.f32 %v256, 1.442695
    %v262 = vpow.pop %v261
    %v263 = vmul.f32 %v257, 1.442695
    %v264 = vpow.pop %v263
    %v265 = vmul.f32 %v258, 1.442695
    %v266 = vpow.pop %v265
    %v267 = vrot.slane %v260, 4
    %v268 = vadd.f32 %v260, %v267
    %v269 = vrot.slane %v268, 2
    %v270 = vadd.f32 %v268, %v269
    %v271 = vrot.slane %v270, 1
    %v272 = vadd.f32 %v270, %v271
    %v273 = vrot.slane %v262, 4
    %v274 = vadd.f32 %v262, %v273
    %v275 = vrot.slane %v274, 2
    %v276 = vadd.f32 %v274, %v275
    %v277 = vrot.slane %v276, 1
    %v278 = vadd.f32 %v276, %v277
    %v279 = vrot.slane %v264, 4
    %v280 = vadd.f32 %v264, %v279
    %v281 = vrot.slane %v280, 2
    %v282 = vadd.f32 %v280, %v281
    %v283 = vrot.slane %v282, 1
    %v284 = vadd.f32 %v282, %v283
    %v285 = vrot.slane %v266, 4
    %v286 = vadd.f32 %v266, %v285
    %v287 = vrot.slane %v286, 2
    %v288 = vadd.f32 %v286, %v287
    %v289 = vrot.slane %v288, 1
    %v290 = vadd.f32 %v288, %v289
    %v291 = vlog2.pop %v272
    %v292 = vmul.f32 %v291, 0.6931472
    %v293 = vlog2.pop %v278
    %v294 = vmul.f32 %v293, 0.6931472
    %v295 = vlog2.pop %v284
    %v296 = vmul.f32 %v295, 0.6931472
    %v297 = vlog2.pop %v290
    %v298 = vmul.f32 %v297, 0.6931472
    %v299 = vadd.f32 %v236, %v292
    %v300 = vadd.f32 %v242, %v294
    %v301 = vadd.f32 %v248, %v296
    %v302 = vadd.f32 %v254, %v298
    %v303 = vlaneseq
    %v304 = vshrl.u32 %v303, 7
    %v305 = vlaneseq
    %v306 = vshrl.u32 %v305, 7
    %v307 = vsub.s32 0, %v306
    %v308 = vrot.slane %v230, %v307
    %v309 = vlaneseq
    %v310 = vshrl.u32 %v309, 7
    %v311 = vsub.s32 1, %v310
    %v312 = vrot.slane %v230, %v311
    %v313 = vlaneseq
    %v314 = vshrl.u32 %v313, 7
    %v315 = vsub.s32 2, %v314
    %v316 = vrot.slane %v230, %v315
    %v317 = vlaneseq
    %v318 = vshrl.u32 %v317, 7
    %v319 = vsub.s32 3, %v318
    %v320 = vrot.slane %v230, %v319
    %vm321 = vcmp.eq.s32.totalorder %v304, %v308
    %vm322 = vcmp.eq.s32.totalorder %v304, %v312
    %vm323 = vcmp.eq.s32.totalorder %v304, %v316
    %vm324 = vcmp.eq.s32.totalorder %v304, %v320
    %v325 = vsel %vm321, %v226, 0.0
    %v326 = vsel %vm322, %v227, 0.0
    %v327 = vsel %vm323, %v228, 0.0
    %v328 = vsel %vm324, %v229, 0.0
    %v329 = vrot.slane %v325, 4
    %v330 = vadd.f32 %v325, %v329
    %v331 = vrot.slane %v330, 2
    %v332 = vadd.f32 %v330, %v331
    %v333 = vrot.slane %v332, 1
    %v334 = vadd.f32 %v332, %v333
    %v335 = vrot.slane %v326, 4
    %v336 = vadd.f32 %v326, %v335
    %v337 = vrot.slane %v336, 2
    %v338 = vadd.f32 %v336, %v337
    %v339 = vrot.slane %v338, 1
    %v340 = vadd.f32 %v338, %v339
    %v341 = vrot.slane %v327, 4
    %v342 = vadd.f32 %v327, %v341
    %v343 = vrot.slane %v342, 2
    %v344 = vadd.f32 %v342, %v343
    %v345 = vrot.slane %v344, 1
    %v346 = vadd.f32 %v344, %v345
    %v347 = vrot.slane %v328, 4
    %v348 = vadd.f32 %v328, %v347
    %v349 = vrot.slane %v348, 2
    %v350 = vadd.f32 %v348, %v349
    %v351 = vrot.slane %v350, 1
    %v352 = vadd.f32 %v350, %v351
    %vm353 = vcmp.ne.s32.totalorder %v230, 100
    %v354 = vsub.f32 %v299, %v334
    %v355 = vsub.f32 %v300, %v340
    %v356 = vsub.f32 %v301, %v346
    %v357 = vsub.f32 %v302, %v352
    %v362 = vcombine.low %v354, %v355
    %v363 = vcombine.low %v356, %v357
    %v365 = vunpack.c.l.s4 1966171168
    %v366 = vunpack.c.0.s8 %v365
    %v367 = vlaneseq
    %v368 = vshrl.u32 %v367, 7
    %v369 = vsub.s32 %v366, %v368
    %v370 = vrot.slane %v362, %v369
    %v372 = vunpack.c.l.s4 1966171168
    %v373 = vunpack.c.0.s8 %v372
    %v374 = vlaneseq
    %v375 = vshrl.u32 %v374, 7
    %v376 = vsub.s32 %v373, %v375
    %v377 = vrot.slane %v363, %v376
    %v378 = vcombine.low %v370, %v377
    %v380 = vunpack.c.l.s4 1966171168
    %v381 = vunpack.c.0.s8 %v380
    %v382 = vlaneseq
    %v383 = vshrl.u32 %v382, 7
    %v384 = vsub.s32 %v381, %v383
    %v385 = vrot.slane %v378, %v384
    %v387 = vsel %vm353, %v385, 0.0
    %v389 = vlaneseq
    %v390 = vshrl.u32 %v389, 7
    %v391 = vsub.s32 0, %v390
    %v392 = vrot.slane %v387, %v391
    %v393 = vlaneseq
    %v394 = vshrl.u32 %v393, 7
    %v395 = vsub.s32 1, %v394
    %v396 = vrot.slane %v387, %v395
    %v397 = vlaneseq
    %v398 = vshrl.u32 %v397, 7
    %v399 = vsub.s32 2, %v398
    %v400 = vrot.slane %v387, %v399
    %v401 = vlaneseq
    %v402 = vshrl.u32 %v401, 7
    %v403 = vsub.s32 3, %v402
    %v404 = vrot.slane %v387, %v403
    %v409 = vsel %vm85, %v392, 0.0
    %v410 = vsel %vm85, %v396, 0.0
    %v411 = vadd.f32 %v409, %v410
    %v412 = vsel %vm85, %v400, 0.0
    %v413 = vadd.f32 %v411, %v412
    %v414 = vsel %vm85, %v404, 0.0
    %v415 = vadd.f32 %v413, %v414
    %416 = vadd.xlane.f32.xlu0 %v415
    %v417 = vpop.xlane.xlu0 %416
    %v418 = vrot.slane %v417, 4
    %v419 = vadd.f32 %v417, %v418
    %v420 = vrot.slane %v419, 2
    %v421 = vadd.f32 %v419, %v420
    %v422 = vrot.slane %v421, 1
    %v423 = vadd.f32 %v421, %v422
    %s424 = vtos %v423
    %v425 = vsel %vm353, 1, 0
    %v426 = vcvt.s32.f32 %v425
    %v428 = vlaneseq
    %v429 = vshrl.u32 %v428, 7
    %v430 = vsub.s32 0, %v429
    %v431 = vrot.slane %v426, %v430
    %v432 = vlaneseq
    %v433 = vshrl.u32 %v432, 7
    %v434 = vsub.s32 1, %v433
    %v435 = vrot.slane %v426, %v434
    %v436 = vlaneseq
    %v437 = vshrl.u32 %v436, 7
    %v438 = vsub.s32 2, %v437
    %v439 = vrot.slane %v426, %v438
    %v440 = vlaneseq
    %v441 = vshrl.u32 %v440, 7
    %v442 = vsub.s32 3, %v441
    %v443 = vrot.slane %v426, %v442
    %v448 = vsel %vm85, %v431, 0.0
    %v449 = vsel %vm85, %v435, 0.0
    %v450 = vadd.f32 %v448, %v449
    %v451 = vsel %vm85, %v439, 0.0
    %v452 = vadd.f32 %v450, %v451
    %v453 = vsel %vm85, %v443, 0.0
    %v454 = vadd.f32 %v452, %v453
    %455 = vadd.xlane.f32.xlu0 %v454
    %v456 = vpop.xlane.xlu0 %455
    %v457 = vrot.slane %v456, 4
    %v458 = vadd.f32 %v456, %v457
    %v459 = vrot.slane %v458, 2
    %v460 = vadd.f32 %v458, %v459
    %v461 = vrot.slane %v460, 1
    %v462 = vadd.f32 %v460, %v461
    %s463 = vtos %v462
    %s464 = sld [smem:[#allocation2 + $0x4]]
    %s465 = sadd.f32 %s464, %s424
    %s466 = scalar_lea.smem [#allocation2], 4
    %467 = sst [smem:[%s466]] %s465
    %s468 = sld [smem:[#allocation2 + $0x5]]
    %s469 = sadd.f32 %s468, %s463
    %s470 = scalar_lea.smem [#allocation2], 5
    %471 = sst [smem:[%s470]] %s469
    %v472 = vld [vmem:[%s5] sm:$0xff]
    %v473 = vld [vmem:[%s5 + $0x8] sm:$0xff]
    %v474 = vld [vmem:[%s5 + $0x10] sm:$0xff]
    %v475 = vld [vmem:[%s5 + $0x18] sm:$0xff]
    %v476 = vld [vmem:[%s5 + $0x20] sm:$0xff]
    %v477 = vld [vmem:[%s5 + $0x28] sm:$0xff]
    %v478 = vld [vmem:[%s5 + $0x30] sm:$0xff]
    %v479 = vld [vmem:[%s5 + $0x38] sm:$0xff]
    %v480 = vld [vmem:[%s6] sm:$0xf]
    %v481 = vmax.f32 %v472, %v476
    %v482 = vrot.slane %v481, 4
    %v483 = vmax.f32 %v481, %v482
    %v484 = vrot.slane %v483, 2
    %v485 = vmax.f32 %v483, %v484
    %v486 = vrot.slane %v485, 1
    %v487 = vmax.f32 %v485, %v486
    %v488 = vmax.f32 %v473, %v477
    %v489 = vrot.slane %v488, 4
    %v490 = vmax.f32 %v488, %v489
    %v491 = vrot.slane %v490, 2
    %v492 = vmax.f32 %v490, %v491
    %v493 = vrot.slane %v492, 1
    %v494 = vmax.f32 %v492, %v493
    %v495 = vmax.f32 %v474, %v478
    %v496 = vrot.slane %v495, 4
    %v497 = vmax.f32 %v495, %v496
    %v498 = vrot.slane %v497, 2
    %v499 = vmax.f32 %v497, %v498
    %v500 = vrot.slane %v499, 1
    %v501 = vmax.f32 %v499, %v500
    %v502 = vmax.f32 %v475, %v479
    %v503 = vrot.slane %v502, 4
    %v504 = vmax.f32 %v502, %v503
    %v505 = vrot.slane %v504, 2
    %v506 = vmax.f32 %v504, %v505
    %v507 = vrot.slane %v506, 1
    %v508 = vmax.f32 %v506, %v507
    %v509 = vsub.f32 %v472, %v487
    %v510 = vsub.f32 %v473, %v494
    %v511 = vsub.f32 %v474, %v501
    %v512 = vsub.f32 %v475, %v508
    %v513 = vsub.f32 %v476, %v487
    %v514 = vsub.f32 %v477, %v494
    %v515 = vsub.f32 %v478, %v501
    %v516 = vsub.f32 %v479, %v508
    %v517 = vmul.f32 %v509, 1.442695
    %v518 = vpow.pop %v517
    %v519 = vmul.f32 %v510, 1.442695
    %v520 = vpow.pop %v519
    %v521 = vmul.f32 %v511, 1.442695
    %v522 = vpow.pop %v521
    %v523 = vmul.f32 %v512, 1.442695
    %v524 = vpow.pop %v523
    %v525 = vmul.f32 %v513, 1.442695
    %v526 = vpow.pop %v525
    %v527 = vmul.f32 %v514, 1.442695
    %v528 = vpow.pop %v527
    %v529 = vmul.f32 %v515, 1.442695
    %v530 = vpow.pop %v529
    %v531 = vmul.f32 %v516, 1.442695
    %v532 = vpow.pop %v531
    %v533 = vadd.f32 %v518, %v526
    %v534 = vrot.slane %v533, 4
    %v535 = vadd.f32 %v533, %v534
    %v536 = vrot.slane %v535, 2
    %v537 = vadd.f32 %v535, %v536
    %v538 = vrot.slane %v537, 1
    %v539 = vadd.f32 %v537, %v538
    %v540 = vadd.f32 %v520, %v528
    %v541 = vrot.slane %v540, 4
    %v542 = vadd.f32 %v540, %v541
    %v543 = vrot.slane %v542, 2
    %v544 = vadd.f32 %v542, %v543
    %v545 = vrot.slane %v544, 1
    %v546 = vadd.f32 %v544, %v545
    %v547 = vadd.f32 %v522, %v530
    %v548 = vrot.slane %v547, 4
    %v549 = vadd.f32 %v547, %v548
    %v550 = vrot.slane %v549, 2
    %v551 = vadd.f32 %v549, %v550
    %v552 = vrot.slane %v551, 1
    %v553 = vadd.f32 %v551, %v552
    %v554 = vadd.f32 %v524, %v532
    %v555 = vrot.slane %v554, 4
    %v556 = vadd.f32 %v554, %v555
    %v557 = vrot.slane %v556, 2
    %v558 = vadd.f32 %v556, %v557
    %v559 = vrot.slane %v558, 1
    %v560 = vadd.f32 %v558, %v559
    %v561 = vlog2.pop %v539
    %v562 = vmul.f32 %v561, 0.6931472
    %v563 = vlog2.pop %v546
    %v564 = vmul.f32 %v563, 0.6931472
    %v565 = vlog2.pop %v553
    %v566 = vmul.f32 %v565, 0.6931472
    %v567 = vlog2.pop %v560
    %v568 = vmul.f32 %v567, 0.6931472
    %v569 = vadd.f32 %v487, %v562
    %v570 = vadd.f32 %v494, %v564
    %v571 = vadd.f32 %v501, %v566
    %v572 = vadd.f32 %v508, %v568
    %v573 = vadd.s32 %v304, 8
    %v574 = vlaneseq
    %v575 = vshrl.u32 %v574, 7
    %v576 = vsub.s32 0, %v575
    %v577 = vrot.slane %v480, %v576
    %v578 = vlaneseq
    %v579 = vshrl.u32 %v578, 7
    %v580 = vsub.s32 1, %v579
    %v581 = vrot.slane %v480, %v580
    %v582 = vlaneseq
    %v583 = vshrl.u32 %v582, 7
    %v584 = vsub.s32 2, %v583
    %v585 = vrot.slane %v480, %v584
    %v586 = vlaneseq
    %v587 = vshrl.u32 %v586, 7
    %v588 = vsub.s32 3, %v587
    %v589 = vrot.slane %v480, %v588
    %vm590 = vcmp.eq.s32.totalorder %v304, %v577
    %vm591 = vcmp.eq.s32.totalorder %v304, %v581
    %vm592 = vcmp.eq.s32.totalorder %v304, %v585
    %vm593 = vcmp.eq.s32.totalorder %v304, %v589
    %vm594 = vcmp.eq.s32.totalorder %v573, %v577
    %vm595 = vcmp.eq.s32.totalorder %v573, %v581
    %vm596 = vcmp.eq.s32.totalorder %v573, %v585
    %vm597 = vcmp.eq.s32.totalorder %v573, %v589
    %v598 = vsel %vm590, %v472, 0.0
    %v599 = vsel %vm591, %v473, 0.0
    %v600 = vsel %vm592, %v474, 0.0
    %v601 = vsel %vm593, %v475, 0.0
    %v602 = vsel %vm594, %v476, 0.0
    %v603 = vsel %vm595, %v477, 0.0
    %v604 = vsel %vm596, %v478, 0.0
    %v605 = vsel %vm597, %v479, 0.0
    %v606 = vadd.f32 %v598, %v602
    %v607 = vrot.slane %v606, 4
    %v608 = vadd.f32 %v606, %v607
    %v609 = vrot.slane %v608, 2
    %v610 = vadd.f32 %v608, %v609
    %v611 = vrot.slane %v610, 1
    %v612 = vadd.f32 %v610, %v611
    %v613 = vadd.f32 %v599, %v603
    %v614 = vrot.slane %v613, 4
    %v615 = vadd.f32 %v613, %v614
    %v616 = vrot.slane %v615, 2
    %v617 = vadd.f32 %v615, %v616
    %v618 = vrot.slane %v617, 1
    %v619 = vadd.f32 %v617, %v618
    %v620 = vadd.f32 %v600, %v604
    %v621 = vrot.slane %v620, 4
    %v622 = vadd.f32 %v620, %v621
    %v623 = vrot.slane %v622, 2
    %v624 = vadd.f32 %v622, %v623
    %v625 = vrot.slane %v624, 1
    %v626 = vadd.f32 %v624, %v625
    %v627 = vadd.f32 %v601, %v605
    %v628 = vrot.slane %v627, 4
    %v629 = vadd.f32 %v627, %v628
    %v630 = vrot.slane %v629, 2
    %v631 = vadd.f32 %v629, %v630
    %v632 = vrot.slane %v631, 1
    %v633 = vadd.f32 %v631, %v632
    %vm634 = vcmp.ne.s32.totalorder %v480, 100
    %v635 = vsub.f32 %v569, %v612
    %v636 = vsub.f32 %v570, %v619
    %v637 = vsub.f32 %v571, %v626
    %v638 = vsub.f32 %v572, %v633
    %v643 = vcombine.low %v635, %v636
    %v644 = vcombine.low %v637, %v638
    %v646 = vunpack.c.l.s4 1966171168
    %v647 = vunpack.c.0.s8 %v646
    %v648 = vlaneseq
    %v649 = vshrl.u32 %v648, 7
    %v650 = vsub.s32 %v647, %v649
    %v651 = vrot.slane %v643, %v650
    %v653 = vunpack.c.l.s4 1966171168
    %v654 = vunpack.c.0.s8 %v653
    %v655 = vlaneseq
    %v656 = vshrl.u32 %v655, 7
    %v657 = vsub.s32 %v654, %v656
    %v658 = vrot.slane %v644, %v657
    %v659 = vcombine.low %v651, %v658
    %v661 = vunpack.c.l.s4 1966171168
    %v662 = vunpack.c.0.s8 %v661
    %v663 = vlaneseq
    %v664 = vshrl.u32 %v663, 7
    %v665 = vsub.s32 %v662, %v664
    %v666 = vrot.slane %v659, %v665
    %v668 = vsel %vm634, %v666, 0.0
    %v670 = vlaneseq
    %v671 = vshrl.u32 %v670, 7
    %v672 = vsub.s32 0, %v671
    %v673 = vrot.slane %v668, %v672
    %v674 = vlaneseq
    %v675 = vshrl.u32 %v674, 7
    %v676 = vsub.s32 1, %v675
    %v677 = vrot.slane %v668, %v676
    %v678 = vlaneseq
    %v679 = vshrl.u32 %v678, 7
    %v680 = vsub.s32 2, %v679
    %v681 = vrot.slane %v668, %v680
    %v682 = vlaneseq
    %v683 = vshrl.u32 %v682, 7
    %v684 = vsub.s32 3, %v683
    %v685 = vrot.slane %v668, %v684
    %v690 = vsel %vm85, %v673, 0.0
    %v691 = vsel %vm85, %v677, 0.0
    %v692 = vadd.f32 %v690, %v691
    %v693 = vsel %vm85, %v681, 0.0
    %v694 = vadd.f32 %v692, %v693
    %v695 = vsel %vm85, %v685, 0.0
    %v696 = vadd.f32 %v694, %v695
    %697 = vadd.xlane.f32.xlu0 %v696
    %v698 = vpop.xlane.xlu0 %697
    %v699 = vrot.slane %v698, 4
    %v700 = vadd.f32 %v698, %v699
    %v701 = vrot.slane %v700, 2
    %v702 = vadd.f32 %v700, %v701
    %v703 = vrot.slane %v702, 1
    %v704 = vadd.f32 %v702, %v703
    %s705 = vtos %v704
    %v706 = vsel %vm634, 1, 0
    %v707 = vcvt.s32.f32 %v706
    %v709 = vlaneseq
    %v710 = vshrl.u32 %v709, 7
    %v711 = vsub.s32 0, %v710
    %v712 = vrot.slane %v707, %v711
    %v713 = vlaneseq
    %v714 = vshrl.u32 %v713, 7
    %v715 = vsub.s32 1, %v714
    %v716 = vrot.slane %v707, %v715
    %v717 = vlaneseq
    %v718 = vshrl.u32 %v717, 7
    %v719 = vsub.s32 2, %v718
    %v720 = vrot.slane %v707, %v719
    %v721 = vlaneseq
    %v722 = vshrl.u32 %v721, 7
    %v723 = vsub.s32 3, %v722
    %v724 = vrot.slane %v707, %v723
    %v729 = vsel %vm85, %v712, 0.0
    %v730 = vsel %vm85, %v716, 0.0
    %v731 = vadd.f32 %v729, %v730
    %v732 = vsel %vm85, %v720, 0.0
    %v733 = vadd.f32 %v731, %v732
    %v734 = vsel %vm85, %v724, 0.0
    %v735 = vadd.f32 %v733, %v734
    %736 = vadd.xlane.f32.xlu0 %v735
    %v737 = vpop.xlane.xlu0 %736
    %v738 = vrot.slane %v737, 4
    %v739 = vadd.f32 %v737, %v738
    %v740 = vrot.slane %v739, 2
    %v741 = vadd.f32 %v739, %v740
    %v742 = vrot.slane %v741, 1
    %v743 = vadd.f32 %v741, %v742
    %s744 = vtos %v743
    %s745 = sld [smem:[#allocation2 + $0x6]]
    %s746 = sadd.f32 %s745, %s705
    %s747 = scalar_lea.smem [#allocation2], 6
    %748 = sst [smem:[%s747]] %s746
    %s749 = sld [smem:[#allocation2 + $0x7]]
    %s750 = sadd.f32 %s749, %s744
    %s751 = scalar_lea.smem [#allocation2], 7
    %752 = sst [smem:[%s751]] %s750
    // Predicated region
    $region34: #{fused_ce_losses.1} parent=1 // pred_check
      %p753 = pneg %p27
    $region35: #{fused_ce_losses.1} parent=1 // pred_check_branch
      %755 = sbr.rel (%p753) target = $region37
    $region36: #{fused_ce_losses.1} parent=1 // pred_region
      %s756 = sld [smem:[#allocation2]]
      %s757 = sld [smem:[#allocation2 + $0x1]]
      %s758 = smax.f32 %s757, 1e-10
      %v759 = vstv %s758
      %v760 = vrcp.pop %v759
      %s761 = vtos %v760
      %s762 = smul.f32 %s756, %s761
      %s763 = scalar_lea.smem [#allocation3], 0
      %764 = sst [smem:[%s763]] %s762
      %s765 = sld [smem:[#allocation2 + $0x2]]
      %s766 = sld [smem:[#allocation2 + $0x3]]
      %s767 = smax.f32 %s766, 1e-10
      %v768 = vstv %s767
      %v769 = vrcp.pop %v768
      %s770 = vtos %v769
      %s771 = smul.f32 %s765, %s770
      %s772 = scalar_lea.smem [#allocation3], 1
      %773 = sst [smem:[%s772]] %s771
      %s774 = sld [smem:[#allocation2 + $0x4]]
      %s775 = sld [smem:[#allocation2 + $0x5]]
      %v776 = vstv %s775
      %v777 = vrcp.pop %v776
      %s778 = vtos %v777
      %s779 = smul.f32 %s774, %s778
      %s780 = scalar_lea.smem [#allocation3], 2
      %781 = sst [smem:[%s780]] %s779
      %s782 = sld [smem:[#allocation2 + $0x6]]
      %s783 = sld [smem:[#allocation2 + $0x7]]
      %v784 = vstv %s783
      %v785 = vrcp.pop %v784
      %s786 = vtos %v785
      %s787 = smul.f32 %s782, %s786
      %s788 = scalar_lea.smem [#allocation3], 3
      %789 = sst [smem:[%s788]] %s787
    $region37: #{fused_ce_losses.1} parent=1 // pred_fallthru
      _
    // Predicated region
    $region38: #{fused_ce_losses.1} parent=1 // pred_check
      _
    $region39: #{fused_ce_losses.1} parent=1 // pred_check_branch
      %791 = sbr.rel (0) target = $region41
    $region40: #{fused_ce_losses.1} parent=1 // pred_region
      %s793 = ssub.s32 16, 16
      %794 = vsyncadd [#allocation4], %s793
      %797 = dma.smem_to_hbm [#allocation3], 16, %s7, [#allocation4]
    $region41: #{fused_ce_losses.1} parent=1 // pred_fallthru
      _
    // Predicated region
    $region42: #{fused_ce_losses.1} parent=1 // pred_check
      _
    $region43: #{fused_ce_losses.1} parent=1 // pred_check_branch
      %799 = sbr.rel (0) target = $region45
    $region44: #{fused_ce_losses.1} parent=1 // pred_region
      %800 = dma.done [#allocation4], 16
    $region45: #{fused_ce_losses.1} parent=1 // pred_fallthru
      _
    %801 = sfence
    %802 = vsyncpa [#allocation4], 1

</llo_original>
